<compile_context>
chip_gen: v7x
topology: tpu7x:2x2x1
jax: 0.10.0
libtpu: 0.0.40
codegen_flags: <defaults>
</compile_context>

<pallas_src>
import math

import jax
import jax.numpy as jnp
from jax import lax
from jax.experimental import pallas as pl
from jax.experimental.pallas import tpu as pltpu


def basic_block_kernel(x_ref, w1_ref, sc1_ref, sh1_ref, w2_ref, sc2_ref, sh2_ref,
                       o_ref):
    # Block shapes (per grid step = one batch block of NB images):
    #   x_ref  : (NB, H, W*Cin)        lane-dense input (residual source too)
    #   w1_ref : (W*Cin, 3*W*Cmid)     dy-concatenated banded conv1 weights
    #   sc1/sh1: (1, W*Cmid)           folded BN1 scale / shift (per output lane)
    #   w2_ref : (W*Cmid, 3*W*Cmid)    dy-concatenated banded conv2 weights
    #   sc2/sh2: (1, W*Cmid)
    #   o_ref  : (NB, H, W*Cmid)       lane-dense output
    NB, H, WCi = x_ref.shape
    WCo = o_ref.shape[-1]
    mxu_dtype = w1_ref.dtype

    def conv3x3(act2d, w_ref):
        # One MXU matmul over all three kernel rows: (NB*H, K) @ (K, 3*WCo),
        # f32 accumulation.  out[b,h] = p0[b,h-1] + p1[b,h] + p2[b,h+1] with
        # zero rows outside [0, H) — the vertical shift is applied to the
        # RESULTS (cheap value-level sublane shift), never to the activations,
        # and stays inside each image (axis=1 of the (NB, H, .) view) so rows
        # never leak across images in a batch block.
        p = jnp.dot(act2d, w_ref[...], preferred_element_type=jnp.float32)
        p = p.reshape(NB, H, 3 * WCo)
        p0 = p[:, :, 0 * WCo:1 * WCo]
        p1 = p[:, :, 1 * WCo:2 * WCo]
        p2 = p[:, :, 2 * WCo:3 * WCo]
        zrow = jnp.zeros((NB, 1, WCo), jnp.float32)
        up = jnp.concatenate([zrow, p0[:, :H - 1, :]], axis=1)   # p0[h-1], row 0 = 0
        dn = jnp.concatenate([p2[:, 1:, :], zrow], axis=1)       # p2[h+1], row H-1 = 0
        return p1 + up + dn                                      # (NB, H, WCo) f32

    # ---- conv1 + folded bn1 + relu (epilogue in f32, fully lane-dense)
    x_mx = x_ref[...].astype(mxu_dtype).reshape(NB * H, WCi)
    y1 = conv3x3(x_mx, w1_ref)
    y1 = jnp.maximum(y1 * sc1_ref[...] + sh1_ref[...], 0.0)

    # ---- conv2 + folded bn2 + residual add + relu
    y1_mx = y1.reshape(NB * H, WCo).astype(mxu_dtype)
    y2 = conv3x3(y1_mx, w2_ref)

    res = x_ref[...].astype(jnp.float32)           # reload: f32 residual, not kept live
    out = jnp.maximum(y2 * sc2_ref[...] + sh2_ref[...] + res, 0.0)
    o_ref[...] = out.astype(o_ref.dtype)


def build_banded_weights(w_hwio, W):
    """Fold the dx taps (and implicit horizontal zero padding) of a 3x3 conv into
    a banded matrix per kernel row: B[dy, w_in*Cin + ci, w_out*Cout + co]."""
    kh, kw, Cin, Cout = w_hwio.shape
    w_in = jnp.arange(W)[:, None]            # input column  (W, 1)
    w_out = jnp.arange(W)[None, :]           # output column (1, W)
    dx = w_in - w_out + 1                    # kernel column index (W, W)
    valid = (dx >= 0) & (dx < kw)
    dxc = jnp.clip(dx, 0, kw - 1)
    taps = w_hwio[:, dxc]                    # (kh, W, W, Cin, Cout)
    taps = taps * valid[None, :, :, None, None].astype(w_hwio.dtype)
    return taps.transpose(0, 1, 3, 2, 4).reshape(kh, W * Cin, W * Cout)


def _choose_batch_block(N, H):
    """Target M = NB*H in ~256-512 while keeping >= min(N, 4) grid steps
    (pipelining; >= 2 steps also feeds both v7x TensorCores)."""
    target_rows = 256
    nb = max(1, min(N, target_rows // max(H, 1)))
    min_steps = min(N, 4)
    nb = min(nb, max(1, N // min_steps))
    while N % nb:
        nb -= 1
    return nb


def basic_block_pallas(x_nhwc, w1_hwio, s1, b1, w2_hwio, s2, b2,
                       *, mxu_dtype=jnp.bfloat16, batch_block=None):
    N, H, W, Cin = x_nhwc.shape
    Cmid = w1_hwio.shape[-1]
    # Default BasicBlock: stride=1, downsample=None => residual requires Cin == Cmid.
    assert Cin == Cmid, "default BasicBlock (stride=1, no downsample) needs Cin == Cmid"
    assert w1_hwio.shape[:2] == (3, 3) and w2_hwio.shape == (3, 3, Cmid, Cmid)
    assert H % 8 == 0, "H must be a multiple of 8 (sublane tiling)"
    assert (W * Cin) % 128 == 0, "kernel targets a lane-dense layout (W*C % 128 == 0)"

    NB = _choose_batch_block(N, H) if batch_block is None else batch_block
    assert N % NB == 0

    WCi, WCo = W * Cin, W * Cmid
    x2 = x_nhwc.reshape(N, H, WCi)                               # lane-dense view (free)

    # Banded weights with the three dy taps concatenated along N: (K, 3*WCo).
    B1 = build_banded_weights(w1_hwio, W)
    B2 = build_banded_weights(w2_hwio, W)
    W1c = B1.transpose(1, 0, 2).reshape(WCi, 3 * WCo).astype(mxu_dtype)
    W2c = B2.transpose(1, 0, 2).reshape(WCo, 3 * WCo).astype(mxu_dtype)

    # Per-output-lane folded BN parameters (f32 epilogue).
    sc1 = jnp.tile(s1, W).reshape(1, WCo).astype(jnp.float32)
    sh1 = jnp.tile(b1, W).reshape(1, WCo).astype(jnp.float32)
    sc2 = jnp.tile(s2, W).reshape(1, WCo).astype(jnp.float32)
    sh2 = jnp.tile(b2, W).reshape(1, WCo).astype(jnp.float32)

    # VMEM budget: double-buffered x/out blocks + (double-buffered) weights + BN.
    act_bytes = jnp.dtype(x_nhwc.dtype).itemsize
    mxu_bytes = jnp.dtype(mxu_dtype).itemsize
    vmem_need = (2 * NB * H * (WCi + WCo) * act_bytes
                 + 2 * (WCi + WCo) * 3 * WCo * mxu_bytes
                 + 2 * 4 * WCo * 4)
    vmem_limit = int(min(48 << 20, max(32 << 20, 2 * vmem_need)))

    flops = 2 * N * H * (WCi + WCo) * 3 * WCo
    bytes_accessed = (N * H * (WCi + WCo) * act_bytes
                      + (WCi + WCo) * 3 * WCo * mxu_bytes
                      + 4 * WCo * 4)

    out = pl.pallas_call(
        basic_block_kernel,
        out_shape=jax.ShapeDtypeStruct((N, H, WCo), x_nhwc.dtype),
        grid_spec=pltpu.PrefetchScalarGridSpec(
            num_scalar_prefetch=0,
            grid=(N // NB,),
            in_specs=[
                pl.BlockSpec((NB, H, WCi), lambda n: (n, 0, 0)),
                pl.BlockSpec((WCi, 3 * WCo), lambda n: (0, 0)),
                pl.BlockSpec((1, WCo), lambda n: (0, 0)),
                pl.BlockSpec((1, WCo), lambda n: (0, 0)),
                pl.BlockSpec((WCo, 3 * WCo), lambda n: (0, 0)),
                pl.BlockSpec((1, WCo), lambda n: (0, 0)),
                pl.BlockSpec((1, WCo), lambda n: (0, 0)),
            ],
            out_specs=pl.BlockSpec((NB, H, WCo), lambda n: (n, 0, 0)),
        ),
        compiler_params=pltpu.CompilerParams(
            dimension_semantics=("parallel",),
            vmem_limit_bytes=vmem_limit,
        ),
        cost_estimate=pl.CostEstimate(flops=int(flops), transcendentals=0,
                                      bytes_accessed=int(bytes_accessed)),
    )(x2, W1c, sc1, sh1, W2c, sc2, sh2)
    return out.reshape(N, H, W, Cmid)


def fold_bn(gamma, beta, mean, var, eps=1e-5):
    scale = gamma / jnp.sqrt(var + eps)
    shift = beta - mean * scale
    return scale, shift


def reference_basic_block(x_nchw, w1_oihw, bn1, w2_oihw, bn2, eps=1e-5):
    """Pure-JAX NCHW reference mirroring the PyTorch forward (BN in eval mode)."""
    def conv(x, w):
        dn = lax.conv_dimension_numbers(x.shape, w.shape, ('NCHW', 'OIHW', 'NCHW'))
        return lax.conv_general_dilated(x, w, (1, 1), ((1, 1), (1, 1)),
                                        dimension_numbers=dn)

    def bn(x, params):
        g, b, m, v = params
        g, b, m, v = (t[None, :, None, None] for t in (g, b, m, v))
        return (x - m) / jnp.sqrt(v + eps) * g + b

    out = jnp.maximum(bn(conv(x_nchw, w1_oihw), bn1), 0.0)
    out = bn(conv(out, w2_oihw), bn2)
    out = jnp.maximum(out + x_nchw, 0.0)
    return out


if __name__ == "__main__":
    # Small shapes consistent with BasicBlock(inplanes=planes, stride=1, downsample=None).
    # N=8 so the parallel grid has >= 4 steps (pipelining / both v7x TCs busy).
    N, C, H, W = 8, 8, 16, 16
    inplanes = planes = C
    eps = 1e-5

    key = jax.random.PRNGKey(0)
    ks = jax.random.split(key, 12)

    x_nchw = jax.random.normal(ks[0], (N, C, H, W), jnp.float32)

    fan1 = 9 * inplanes
    w1_oihw = jax.random.normal(ks[1], (planes, inplanes, 3, 3), jnp.float32) * math.sqrt(2.0 / fan1)
    fan2 = 9 * planes
    w2_oihw = jax.random.normal(ks[2], (planes, planes, 3, 3), jnp.float32) * math.sqrt(2.0 / fan2)

    g1 = 1.0 + 0.1 * jax.random.normal(ks[3], (planes,), jnp.float32)
    be1 = 0.1 * jax.random.normal(ks[4], (planes,), jnp.float32)
    m1 = 0.1 * jax.random.normal(ks[5], (planes,), jnp.float32)
    v1 = jax.random.uniform(ks[6], (planes,), jnp.float32, 0.5, 1.5)

    g2 = 1.0 + 0.1 * jax.random.normal(ks[7], (planes,), jnp.float32)
    be2 = 0.1 * jax.random.normal(ks[8], (planes,), jnp.float32)
    m2 = 0.1 * jax.random.normal(ks[9], (planes,), jnp.float32)
    v2 = jax.random.uniform(ks[10], (planes,), jnp.float32, 0.5, 1.5)

    # Fold BN (inference / running-stats mode) to per-channel scale & shift.
    s1, b1 = fold_bn(g1, be1, m1, v1, eps)
    s2, b2 = fold_bn(g2, be2, m2, v2, eps)

    # Kernel-side layouts: NHWC activations, HWIO weights.
    x_nhwc = jnp.transpose(x_nchw, (0, 2, 3, 1))
    w1_hwio = jnp.transpose(w1_oihw, (2, 3, 1, 0))
    w2_hwio = jnp.transpose(w2_oihw, (2, 3, 1, 0))

    ref = reference_basic_block(x_nchw, w1_oihw, (g1, be1, m1, v1),
                                w2_oihw, (g2, be2, m2, v2), eps)
    jax.block_until_ready(ref)

    # f32 MXU operands: tight correctness check.
    out_f32 = basic_block_pallas(x_nhwc, w1_hwio, s1, b1, w2_hwio, s2, b2,
                                 mxu_dtype=jnp.float32)
    out_f32 = jnp.transpose(out_f32, (0, 3, 1, 2))
    jax.block_until_ready(out_f32)
    assert out_f32.shape == ref.shape == (N, C, H, W)
    assert jnp.allclose(out_f32, ref, atol=1e-3, rtol=1e-3), (
        float(jnp.max(jnp.abs(out_f32 - ref))))

    # Default path: bf16 MXU operands, f32 accumulation/epilogue/residual.
    # Loose tolerance is the intended accuracy contract for inference.
    out_bf16 = basic_block_pallas(x_nhwc, w1_hwio, s1, b1, w2_hwio, s2, b2)
    out_bf16 = jnp.transpose(out_bf16, (0, 3, 1, 2))
    jax.block_until_ready(out_bf16)
    assert jnp.allclose(out_bf16, ref, atol=0.2, rtol=0.05), (
        float(jnp.max(jnp.abs(out_bf16 - ref))))

    print("KERNEL_OK")
</pallas_src>

<mosaic_0001>
module attributes {stable_mosaic.version = 11 : i64} {
  func.func @basic_block_kernel(%arg0: i32, %arg1: memref<2x16x128xf32, #tpu.memory_space<vmem>>, %arg2: memref<128x384xf32, #tpu.memory_space<vmem>>, %arg3: memref<1x128xf32, #tpu.memory_space<vmem>>, %arg4: memref<1x128xf32, #tpu.memory_space<vmem>>, %arg5: memref<128x384xf32, #tpu.memory_space<vmem>>, %arg6: memref<1x128xf32, #tpu.memory_space<vmem>>, %arg7: memref<1x128xf32, #tpu.memory_space<vmem>>, %arg8: memref<2x16x128xf32, #tpu.memory_space<vmem>>) attributes {dimension_semantics = [#tpu.dimension_semantics<parallel>], iteration_bounds = array<i64: 4>, scalar_prefetch = 0 : i64, scratch_operands = 0 : i64, tpu.core_type = #tpu.core_type<tc>, window_params = [{transform_indices = @transform_0, window_bounds = array<i64: 2, 16, 128>}, {pipeline_mode = #tpu.pipeline_mode<synchronous>, transform_indices = @transform_1, window_bounds = array<i64: 128, 384>}, {pipeline_mode = #tpu.pipeline_mode<synchronous>, transform_indices = @transform_2, window_bounds = array<i64: 1, 128>}, {pipeline_mode = #tpu.pipeline_mode<synchronous>, transform_indices = @transform_3, window_bounds = array<i64: 1, 128>}, {pipeline_mode = #tpu.pipeline_mode<synchronous>, transform_indices = @transform_4, window_bounds = array<i64: 128, 384>}, {pipeline_mode = #tpu.pipeline_mode<synchronous>, transform_indices = @transform_5, window_bounds = array<i64: 1, 128>}, {pipeline_mode = #tpu.pipeline_mode<synchronous>, transform_indices = @transform_6, window_bounds = array<i64: 1, 128>}, {transform_indices = @transform_7, window_bounds = array<i64: 2, 16, 128>}]} {
    %c0 = arith.constant 0 : index
    %c0_0 = arith.constant 0 : index
    %c0_1 = arith.constant 0 : index
    %0 = vector.load %arg1[%c0, %c0_0, %c0_1] : memref<2x16x128xf32, #tpu.memory_space<vmem>>, vector<2x16x128xf32>
    %1 = vector.shape_cast %0 : vector<2x16x128xf32> to vector<32x128xf32>
    %c0_2 = arith.constant 0 : index
    %c0_3 = arith.constant 0 : index
    %2 = vector.load %arg2[%c0_2, %c0_3] : memref<128x384xf32, #tpu.memory_space<vmem>>, vector<128x384xf32>
    %cst = arith.constant dense<0.000000e+00> : vector<32x384xf32>
    %3 = tpu.matmul %1, %2, %cst {dimension_numbers = #tpu.dot_dimension_numbers<[1], [0], [0], [1], [0, 0, 1, 1], [], []>} : vector<32x128xf32>, vector<128x384xf32>, vector<32x384xf32> -> vector<32x384xf32>
    %4 = vector.shape_cast %3 : vector<32x384xf32> to vector<2x16x384xf32>
    %5 = vector.extract_strided_slice %4 {offsets = [0, 0, 0], sizes = [2, 16, 128], strides = [1, 1, 1]} : vector<2x16x384xf32> to vector<2x16x128xf32>
    %6 = vector.extract_strided_slice %4 {offsets = [0, 0, 128], sizes = [2, 16, 128], strides = [1, 1, 1]} : vector<2x16x384xf32> to vector<2x16x128xf32>
    %7 = vector.extract_strided_slice %4 {offsets = [0, 0, 256], sizes = [2, 16, 128], strides = [1, 1, 1]} : vector<2x16x384xf32> to vector<2x16x128xf32>
    %cst_4 = arith.constant 0.000000e+00 : f32
    %8 = vector.broadcast %cst_4 : f32 to vector<2x1x128xf32>
    %9 = vector.extract_strided_slice %5 {offsets = [0, 0, 0], sizes = [2, 15, 128], strides = [1, 1, 1]} : vector<2x16x128xf32> to vector<2x15x128xf32>
    %10 = tpu.concatenate %8, %9 in 1 : vector<2x1x128xf32>, vector<2x15x128xf32> -> vector<2x16x128xf32>
    %11 = vector.extract_strided_slice %7 {offsets = [0, 1, 0], sizes = [2, 15, 128], strides = [1, 1, 1]} : vector<2x16x128xf32> to vector<2x15x128xf32>
    %12 = tpu.concatenate %11, %8 in 1 : vector<2x15x128xf32>, vector<2x1x128xf32> -> vector<2x16x128xf32>
    %13 = arith.addf %6, %10 : vector<2x16x128xf32>
    %14 = arith.addf %13, %12 : vector<2x16x128xf32>
    %c0_5 = arith.constant 0 : index
    %c0_6 = arith.constant 0 : index
    %15 = vector.load %arg3[%c0_5, %c0_6] : memref<1x128xf32, #tpu.memory_space<vmem>>, vector<1x128xf32>
    %16 = vector.shape_cast %15 : vector<1x128xf32> to vector<1x1x128xf32>
    %17 = vector.broadcast %16 : vector<1x1x128xf32> to vector<2x16x128xf32>
    %18 = arith.mulf %14, %17 : vector<2x16x128xf32>
    %c0_7 = arith.constant 0 : index
    %c0_8 = arith.constant 0 : index
    %19 = vector.load %arg4[%c0_7, %c0_8] : memref<1x128xf32, #tpu.memory_space<vmem>>, vector<1x128xf32>
    %20 = vector.shape_cast %19 : vector<1x128xf32> to vector<1x1x128xf32>
    %21 = vector.broadcast %20 : vector<1x1x128xf32> to vector<2x16x128xf32>
    %22 = arith.addf %18, %21 : vector<2x16x128xf32>
    %cst_9 = arith.constant 0.000000e+00 : f32
    %23 = vector.broadcast %cst_9 : f32 to vector<2x16x128xf32>
    %24 = arith.maximumf %22, %23 : vector<2x16x128xf32>
    %25 = vector.shape_cast %24 : vector<2x16x128xf32> to vector<32x128xf32>
    %c0_10 = arith.constant 0 : index
    %c0_11 = arith.constant 0 : index
    %26 = vector.load %arg5[%c0_10, %c0_11] : memref<128x384xf32, #tpu.memory_space<vmem>>, vector<128x384xf32>
    %cst_12 = arith.constant dense<0.000000e+00> : vector<32x384xf32>
    %27 = tpu.matmul %25, %26, %cst_12 {dimension_numbers = #tpu.dot_dimension_numbers<[1], [0], [0], [1], [0, 0, 1, 1], [], []>} : vector<32x128xf32>, vector<128x384xf32>, vector<32x384xf32> -> vector<32x384xf32>
    %28 = vector.shape_cast %27 : vector<32x384xf32> to vector<2x16x384xf32>
    %29 = vector.extract_strided_slice %28 {offsets = [0, 0, 0], sizes = [2, 16, 128], strides = [1, 1, 1]} : vector<2x16x384xf32> to vector<2x16x128xf32>
    %30 = vector.extract_strided_slice %28 {offsets = [0, 0, 128], sizes = [2, 16, 128], strides = [1, 1, 1]} : vector<2x16x384xf32> to vector<2x16x128xf32>
    %31 = vector.extract_strided_slice %28 {offsets = [0, 0, 256], sizes = [2, 16, 128], strides = [1, 1, 1]} : vector<2x16x384xf32> to vector<2x16x128xf32>
    %cst_13 = arith.constant 0.000000e+00 : f32
    %32 = vector.broadcast %cst_13 : f32 to vector<2x1x128xf32>
    %33 = vector.extract_strided_slice %29 {offsets = [0, 0, 0], sizes = [2, 15, 128], strides = [1, 1, 1]} : vector<2x16x128xf32> to vector<2x15x128xf32>
    %34 = tpu.concatenate %32, %33 in 1 : vector<2x1x128xf32>, vector<2x15x128xf32> -> vector<2x16x128xf32>
    %35 = vector.extract_strided_slice %31 {offsets = [0, 1, 0], sizes = [2, 15, 128], strides = [1, 1, 1]} : vector<2x16x128xf32> to vector<2x15x128xf32>
    %36 = tpu.concatenate %35, %32 in 1 : vector<2x15x128xf32>, vector<2x1x128xf32> -> vector<2x16x128xf32>
    %37 = arith.addf %30, %34 : vector<2x16x128xf32>
    %38 = arith.addf %37, %36 : vector<2x16x128xf32>
    %c0_14 = arith.constant 0 : index
    %c0_15 = arith.constant 0 : index
    %c0_16 = arith.constant 0 : index
    %39 = vector.load %arg1[%c0_14, %c0_15, %c0_16] : memref<2x16x128xf32, #tpu.memory_space<vmem>>, vector<2x16x128xf32>
    %c0_17 = arith.constant 0 : index
    %c0_18 = arith.constant 0 : index
    %40 = vector.load %arg6[%c0_17, %c0_18] : memref<1x128xf32, #tpu.memory_space<vmem>>, vector<1x128xf32>
    %41 = vector.shape_cast %40 : vector<1x128xf32> to vector<1x1x128xf32>
    %42 = vector.broadcast %41 : vector<1x1x128xf32> to vector<2x16x128xf32>
    %43 = arith.mulf %38, %42 : vector<2x16x128xf32>
    %c0_19 = arith.constant 0 : index
    %c0_20 = arith.constant 0 : index
    %44 = vector.load %arg7[%c0_19, %c0_20] : memref<1x128xf32, #tpu.memory_space<vmem>>, vector<1x128xf32>
    %45 = vector.shape_cast %44 : vector<1x128xf32> to vector<1x1x128xf32>
    %46 = vector.broadcast %45 : vector<1x1x128xf32> to vector<2x16x128xf32>
    %47 = arith.addf %43, %46 : vector<2x16x128xf32>
    %48 = arith.addf %47, %39 : vector<2x16x128xf32>
    %cst_21 = arith.constant 0.000000e+00 : f32
    %49 = vector.broadcast %cst_21 : f32 to vector<2x16x128xf32>
    %50 = arith.maximumf %48, %49 : vector<2x16x128xf32>
    %c0_22 = arith.constant 0 : index
    %c0_23 = arith.constant 0 : index
    %c0_24 = arith.constant 0 : index
    %51 = vector.load %arg8[%c0_22, %c0_23, %c0_24] : memref<2x16x128xf32, #tpu.memory_space<vmem>>, vector<2x16x128xf32>
    tpu.vector_store %arg8[%c0_22, %c0_23, %c0_24], %50 {strides = array<i32>} : memref<2x16x128xf32, #tpu.memory_space<vmem>>, vector<2x16x128xf32>,
    return
  }
  func.func @transform_0(%arg0: i32) -> (i32, i32, i32) {
    %c0_i32 = arith.constant 0 : i32
    %c0_i32_0 = arith.constant 0 : i32
    %c0_i32_1 = arith.constant 0 : i32
    return %arg0, %c0_i32, %c0_i32_0 : i32, i32, i32
  }
  func.func @transform_1(%arg0: i32) -> (i32, i32) {
    %c0_i32 = arith.constant 0 : i32
    %c0_i32_0 = arith.constant 0 : i32
    %c0_i32_1 = arith.constant 0 : i32
    return %c0_i32, %c0_i32_0 : i32, i32
  }
  func.func @transform_2(%arg0: i32) -> (i32, i32) {
    %c0_i32 = arith.constant 0 : i32
    %c0_i32_0 = arith.constant 0 : i32
    %c0_i32_1 = arith.constant 0 : i32
    return %c0_i32, %c0_i32_0 : i32, i32
  }
  func.func @transform_3(%arg0: i32) -> (i32, i32) {
    %c0_i32 = arith.constant 0 : i32
    %c0_i32_0 = arith.constant 0 : i32
    %c0_i32_1 = arith.constant 0 : i32
    return %c0_i32, %c0_i32_0 : i32, i32
  }
  func.func @transform_4(%arg0: i32) -> (i32, i32) {
    %c0_i32 = arith.constant 0 : i32
    %c0_i32_0 = arith.constant 0 : i32
    %c0_i32_1 = arith.constant 0 : i32
    return %c0_i32, %c0_i32_0 : i32, i32
  }
  func.func @transform_5(%arg0: i32) -> (i32, i32) {
    %c0_i32 = arith.constant 0 : i32
    %c0_i32_0 = arith.constant 0 : i32
    %c0_i32_1 = arith.constant 0 : i32
    return %c0_i32, %c0_i32_0 : i32, i32
  }
  func.func @transform_6(%arg0: i32) -> (i32, i32) {
    %c0_i32 = arith.constant 0 : i32
    %c0_i32_0 = arith.constant 0 : i32
    %c0_i32_1 = arith.constant 0 : i32
    return %c0_i32, %c0_i32_0 : i32, i32
  }
  func.func @transform_7(%arg0: i32) -> (i32, i32, i32) {
    %c0_i32 = arith.constant 0 : i32
    %c0_i32_0 = arith.constant 0 : i32
    %c0_i32_1 = arith.constant 0 : i32
    return %arg0, %c0_i32, %c0_i32_0 : i32, i32, i32
  }
}

</mosaic_0001>

<llo_original>
// kernel: tpu_custom_call.1
$region0: #{tpu_custom_call.1}
  #allocation0 [shape = 'u32[]', space=smem, size = 0x4, offset = 0x4, fixed_abs, tag = 'smem constant byte address 0x4 - core index']
  #allocation1 [shape = 'u32[144,128]{1,0:T(1,128)}', space=vmem, size = 0x12000, scoped, tag = 'internal scratch']
  %s0 = inlined_call_operand.hbm [shape: f32[8,16,128], index: 0, kind: input, shape index: {}]
  %s1 = inlined_call_operand.hbm [shape: f32[128,384], index: 1, kind: input, shape index: {}]
  %s2 = inlined_call_operand.vmem [shape: f32[1,128], index: 2, kind: input, shape index: {}]
  %s3 = inlined_call_operand.vmem [shape: f32[1,128], index: 3, kind: input, shape index: {}]
  %s4 = inlined_call_operand.hbm [shape: f32[128,384], index: 4, kind: input, shape index: {}]
  %s5 = inlined_call_operand.vmem [shape: f32[1,128], index: 5, kind: input, shape index: {}]
  %s6 = inlined_call_operand.vmem [shape: f32[1,128], index: 6, kind: input, shape index: {}]
  %s7 = inlined_call_operand.hbm [shape: f32[8,16,128], index: 7, kind: output, shape index: {}]
  %s8 = sld [smem:[#allocation0]]
  $region73: #{tpu_custom_call.1} parent=0
    _
  %s10 = ssub.s32 1, %s8
  %s11 = scalar_select 0, %s10, %s8
  $region1: #{tpu_custom_call.1} parent=0
    #allocation2 [shape = 'u8[32768]{0}', space=vmem, size = 0x8000, scoped, tag = 'input window, operand 0']
    #allocation3 [shape = 's32[2]{0}', space=sflag, size = 0x8, scoped, tag = 'scoped memory for tpu_custom_call.1']
    #allocation4 [shape = 's32[2]{0}', space=sflag, size = 0x8, scoped, tag = 'scoped memory for tpu_custom_call.1']
    #allocation5 [shape = 'u8[196608]{0}', space=vmem, size = 0x30000, scoped, tag = 'input window, operand 1, single buffered']
    #allocation6 [shape = 's32[1]{0}', space=sflag, size = 0x4, scoped, tag = 'scoped memory for tpu_custom_call.1']
    #allocation7 [shape = 'u8[196608]{0}', space=vmem, size = 0x30000, scoped, tag = 'input window, operand 4, single buffered']
    #allocation8 [shape = 'u8[32768]{0}', space=vmem, size = 0x8000, scoped, tag = 'output window, operand 0']
    %12 = vsyncpa [#allocation3], 0
    %s13 = scalar_lea.sflag [#allocation3], 1
    %14 = vsyncpa %s13, 0
    %15 = vsyncpa [#allocation6], 0
    %16 = vsyncpa [#allocation4], 0
    %s17 = scalar_lea.sflag [#allocation4], 1
    %18 = vsyncpa %s17, 0
    loop: start=0, step=1, limit=6
    $region2: #{tpu_custom_call.1} parent=1 // loop_pre_header
      _
    $region3: #{tpu_custom_call.1} parent=1 // loop_header
      %s20 = sphi 0, %s24
      %p21 = scmp.ge.s32.totalorder %s20, 6
      %s30 = sphi 0, %s32
      %s33 = sphi 0, %s30
      %s34 = sphi 0, %s33
      %s50 = sphi 0, %s34
      %s54 = sphi 0, %s54
      %s56 = sphi 0, %s54
      %s57 = sphi 0, %s56
      %s71 = sphi 0, %s57
      %s75 = sphi 0, %s75
      %s77 = sphi 0, %s75
      %s78 = sphi 0, %s77
      %s92 = sphi 0, %s78
      %s96 = sphi 0, %s96
      %s98 = sphi 0, %s96
      %s99 = sphi 0, %s98
      %s113 = sphi 0, %s99
      %s117 = sphi 0, %s117
      %s119 = sphi 0, %s117
      %s120 = sphi 0, %s119
      %s134 = sphi 0, %s120
      %s138 = sphi 0, %s138
      %s140 = sphi 0, %s138
      %s141 = sphi 0, %s140
      %s155 = sphi 0, %s141
      %s159 = sphi 0, %s159
      %s161 = sphi 0, %s159
      %s162 = sphi 0, %s161
      %s176 = sphi 0, %s162
      %s182 = sphi 0, %s184
      %s185 = sphi 0, %s182
      %s186 = sphi 0, %s185
      %s202 = sphi 0, %s186
    $region4: #{tpu_custom_call.1} parent=1 // loop_header_branch
      %23 = sbr.rel (%p21) target = $region8
    $region5: #{tpu_custom_call.1} parent=1 // loop_body
      %s25 = ssub.s32 %s20, 1
      %s26 = ssub.s32 %s20, 2
      %s27 = sadd.s32 %s20, 1
      %s28 = ssub.s32 %s20, %s27
      %p29 = scmp.eq.s32.totalorder %s28, 0
      %s31 = sadd.s32 %s30, 1
      %s32 = scalar_select %p29, %s30, %s31
      %p35 = pneg %p29
      %p36 = scmp.eq.s32.totalorder %s20, 3
      %p37 = por %p35, %p36
      %p38 = scmp.ne.s32.totalorder %s30, %s33
      %p39 = scmp.eq.s32.totalorder %s20, 0
      %p40 = por %p38, %p39
      %p41 = scmp.ne.s32.totalorder %s30, %s33
      %p42 = scmp.eq.s32.totalorder %s25, 3
      %p43 = por %p41, %p42
      %p44 = scmp.ne.s32.totalorder %s33, %s34
      %p45 = scmp.eq.s32.totalorder %s25, 0
      %p46 = por %p44, %p45
      %p47 = scmp.ne.s32.totalorder %s33, %s34
      %p48 = scmp.eq.s32.totalorder %s26, 3
      %p49 = por %p47, %p48
      %p51 = scmp.ne.s32.totalorder %s34, %s50
      %p52 = scmp.eq.s32.totalorder %s26, 0
      %p53 = por %p51, %p52
      %s55 = sadd.s32 %s54, 1
      %p58 = scmp.eq.s32.totalorder %s20, 3
      %p59 = scmp.ne.s32.totalorder %s54, %s56
      %p60 = scmp.eq.s32.totalorder %s20, 0
      %p61 = por %p59, %p60
      %p62 = scmp.ne.s32.totalorder %s54, %s56
      %p63 = scmp.eq.s32.totalorder %s25, 3
      %p64 = por %p62, %p63
      %p65 = scmp.ne.s32.totalorder %s56, %s57
      %p66 = scmp.eq.s32.totalorder %s25, 0
      %p67 = por %p65, %p66
      %p68 = scmp.ne.s32.totalorder %s56, %s57
      %p69 = scmp.eq.s32.totalorder %s26, 3
      %p70 = por %p68, %p69
      %p72 = scmp.ne.s32.totalorder %s57, %s71
      %p73 = scmp.eq.s32.totalorder %s26, 0
      %p74 = por %p72, %p73
      %s76 = sadd.s32 %s75, 1
      %p79 = scmp.eq.s32.totalorder %s20, 3
      %p80 = scmp.ne.s32.totalorder %s75, %s77
      %p81 = scmp.eq.s32.totalorder %s20, 0
      %p82 = por %p80, %p81
      %p83 = scmp.ne.s32.totalorder %s75, %s77
      %p84 = scmp.eq.s32.totalorder %s25, 3
      %p85 = por %p83, %p84
      %p86 = scmp.ne.s32.totalorder %s77, %s78
      %p87 = scmp.eq.s32.totalorder %s25, 0
      %p88 = por %p86, %p87
      %p89 = scmp.ne.s32.totalorder %s77, %s78
      %p90 = scmp.eq.s32.totalorder %s26, 3
      %p91 = por %p89, %p90
      %p93 = scmp.ne.s32.totalorder %s78, %s92
      %p94 = scmp.eq.s32.totalorder %s26, 0
      %p95 = por %p93, %p94
      %s97 = sadd.s32 %s96, 1
      %p100 = scmp.eq.s32.totalorder %s20, 3
      %p101 = scmp.ne.s32.totalorder %s96, %s98
      %p102 = scmp.eq.s32.totalorder %s20, 0
      %p103 = por %p101, %p102
      %p104 = scmp.ne.s32.totalorder %s96, %s98
      %p105 = scmp.eq.s32.totalorder %s25, 3
      %p106 = por %p104, %p105
      %p107 = scmp.ne.s32.totalorder %s98, %s99
      %p108 = scmp.eq.s32.totalorder %s25, 0
      %p109 = por %p107, %p108
      %p110 = scmp.ne.s32.totalorder %s98, %s99
      %p111 = scmp.eq.s32.totalorder %s26, 3
      %p112 = por %p110, %p111
      %p114 = scmp.ne.s32.totalorder %s99, %s113
      %p115 = scmp.eq.s32.totalorder %s26, 0
      %p116 = por %p114, %p115
      %s118 = sadd.s32 %s117, 1
      %p121 = scmp.eq.s32.totalorder %s20, 3
      %p122 = scmp.ne.s32.totalorder %s117, %s119
      %p123 = scmp.eq.s32.totalorder %s20, 0
      %p124 = por %p122, %p123
      %p125 = scmp.ne.s32.totalorder %s117, %s119
      %p126 = scmp.eq.s32.totalorder %s25, 3
      %p127 = por %p125, %p126
      %p128 = scmp.ne.s32.totalorder %s119, %s120
      %p129 = scmp.eq.s32.totalorder %s25, 0
      %p130 = por %p128, %p129
      %p131 = scmp.ne.s32.totalorder %s119, %s120
      %p132 = scmp.eq.s32.totalorder %s26, 3
      %p133 = por %p131, %p132
      %p135 = scmp.ne.s32.totalorder %s120, %s134
      %p136 = scmp.eq.s32.totalorder %s26, 0
      %p137 = por %p135, %p136
      %s139 = sadd.s32 %s138, 1
      %p142 = scmp.eq.s32.totalorder %s20, 3
      %p143 = scmp.ne.s32.totalorder %s138, %s140
      %p144 = scmp.eq.s32.totalorder %s20, 0
      %p145 = por %p143, %p144
      %p146 = scmp.ne.s32.totalorder %s138, %s140
      %p147 = scmp.eq.s32.totalorder %s25, 3
      %p148 = por %p146, %p147
      %p149 = scmp.ne.s32.totalorder %s140, %s141
      %p150 = scmp.eq.s32.totalorder %s25, 0
      %p151 = por %p149, %p150
      %p152 = scmp.ne.s32.totalorder %s140, %s141
      %p153 = scmp.eq.s32.totalorder %s26, 3
      %p154 = por %p152, %p153
      %p156 = scmp.ne.s32.totalorder %s141, %s155
      %p157 = scmp.eq.s32.totalorder %s26, 0
      %p158 = por %p156, %p157
      %s160 = sadd.s32 %s159, 1
      %p163 = scmp.eq.s32.totalorder %s20, 3
      %p164 = scmp.ne.s32.totalorder %s159, %s161
      %p165 = scmp.eq.s32.totalorder %s20, 0
      %p166 = por %p164, %p165
      %p167 = scmp.ne.s32.totalorder %s159, %s161
      %p168 = scmp.eq.s32.totalorder %s25, 3
      %p169 = por %p167, %p168
      %p170 = scmp.ne.s32.totalorder %s161, %s162
      %p171 = scmp.eq.s32.totalorder %s25, 0
      %p172 = por %p170, %p171
      %p173 = scmp.ne.s32.totalorder %s161, %s162
      %p174 = scmp.eq.s32.totalorder %s26, 3
      %p175 = por %p173, %p174
      %p177 = scmp.ne.s32.totalorder %s162, %s176
      %p178 = scmp.eq.s32.totalorder %s26, 0
      %p179 = por %p177, %p178
      %s180 = ssub.s32 %s20, %s27
      %p181 = scmp.eq.s32.totalorder %s180, 0
      %s183 = sadd.s32 %s182, 1
      %s184 = scalar_select %p181, %s182, %s183
      %p187 = pneg %p181
      %p188 = scmp.eq.s32.totalorder %s20, 3
      %p189 = por %p187, %p188
      %p190 = scmp.ne.s32.totalorder %s182, %s185
      %p191 = scmp.eq.s32.totalorder %s20, 0
      %p192 = por %p190, %p191
      %p193 = scmp.ne.s32.totalorder %s182, %s185
      %p194 = scmp.eq.s32.totalorder %s25, 3
      %p195 = por %p193, %p194
      %p196 = scmp.ne.s32.totalorder %s185, %s186
      %p197 = scmp.eq.s32.totalorder %s25, 0
      %p198 = por %p196, %p197
      %p199 = scmp.ne.s32.totalorder %s185, %s186
      %p200 = scmp.eq.s32.totalorder %s26, 3
      %p201 = por %p199, %p200
      %p203 = scmp.ne.s32.totalorder %s186, %s202
      %p204 = scmp.eq.s32.totalorder %s26, 0
      %p205 = por %p203, %p204
      %p206 = scmp.le.s32.totalorder 1, %s20
      %p207 = scmp.lt.s32.totalorder %s20, 5
      %p208 = pnand %p206, %p207
      %p209 = pneg %p208
      // Predicated region
      $region9: #{tpu_custom_call.1} parent=5 // pred_check
        _
      $region10: #{tpu_custom_call.1} parent=5 // pred_check_branch
        %211 = sbr.rel (%p208) target = $region12
      $region11: #{tpu_custom_call.1} parent=5 // pred_region
        %s212 = ssub.s32 %s20, 1
        // Predicated region
        $region13: #{tpu_custom_call.1} parent=11 // pred_check
          %p213 = pneg %p67
        $region14: #{tpu_custom_call.1} parent=11 // pred_check_branch
          %215 = sbr.rel (%p213) target = $region16
        $region15: #{tpu_custom_call.1} parent=11 // pred_region
          %s217 = ssub.s32 6144, 6144
          %218 = vsyncadd [#allocation6], %s217
          %s219 = sshll.u32 [#allocation5], 4
          %s220 = int_to_ptr.vmem [resolvable:$true] %s219
          %225 = dma.hbm_to_vmem [thread:$0]  %s1, 6144, %s220, [#allocation6], 384, 384, 24
        $region16: #{tpu_custom_call.1} parent=11 // pred_fallthru
          _
        // Predicated region
        $region17: #{tpu_custom_call.1} parent=11 // pred_check
          %p226 = pneg %p88
        $region18: #{tpu_custom_call.1} parent=11 // pred_check_branch
          %228 = sbr.rel (%p226) target = $region20
        $region19: #{tpu_custom_call.1} parent=11 // pred_region
          _
        $region20: #{tpu_custom_call.1} parent=11 // pred_fallthru
          _
        // Predicated region
        $region21: #{tpu_custom_call.1} parent=11 // pred_check
          %p229 = pneg %p109
        $region22: #{tpu_custom_call.1} parent=11 // pred_check_branch
          %231 = sbr.rel (%p229) target = $region24
        $region23: #{tpu_custom_call.1} parent=11 // pred_region
          _
        $region24: #{tpu_custom_call.1} parent=11 // pred_fallthru
          _
        // Predicated region
        $region25: #{tpu_custom_call.1} parent=11 // pred_check
          %p232 = pneg %p130
        $region26: #{tpu_custom_call.1} parent=11 // pred_check_branch
          %234 = sbr.rel (%p232) target = $region28
        $region27: #{tpu_custom_call.1} parent=11 // pred_region
          %s236 = ssub.s32 6144, 6144
          %237 = vsyncadd [#allocation6], %s236
          %s238 = sshll.u32 [#allocation7], 4
          %s239 = int_to_ptr.vmem [resolvable:$true] %s238
          %244 = dma.hbm_to_vmem [thread:$0]  %s4, 6144, %s239, [#allocation6], 384, 384, 24
        $region28: #{tpu_custom_call.1} parent=11 // pred_fallthru
          _
        // Predicated region
        $region29: #{tpu_custom_call.1} parent=11 // pred_check
          %p245 = pneg %p151
        $region30: #{tpu_custom_call.1} parent=11 // pred_check_branch
          %247 = sbr.rel (%p245) target = $region32
        $region31: #{tpu_custom_call.1} parent=11 // pred_region
          _
        $region32: #{tpu_custom_call.1} parent=11 // pred_fallthru
          _
        // Predicated region
        $region33: #{tpu_custom_call.1} parent=11 // pred_check
          %p248 = pneg %p172
        $region34: #{tpu_custom_call.1} parent=11 // pred_check_branch
          %250 = sbr.rel (%p248) target = $region36
        $region35: #{tpu_custom_call.1} parent=11 // pred_region
          _
        $region36: #{tpu_custom_call.1} parent=11 // pred_fallthru
          _
      $region12: #{tpu_custom_call.1} parent=5 // pred_fallthru
        _
      %p251 = scmp.lt.s32.totalorder %s20, 4
      // Predicated region
      $region37: #{tpu_custom_call.1} parent=5 // pred_check
        %p252 = pneg %p251
      $region38: #{tpu_custom_call.1} parent=5 // pred_check_branch
        %254 = sbr.rel (%p252) target = $region40
      $region39: #{tpu_custom_call.1} parent=5 // pred_region
        // Predicated region
        $region41: #{tpu_custom_call.1} parent=39 // pred_check
          %p255 = pneg %p40
        $region42: #{tpu_custom_call.1} parent=39 // pred_check_branch
          %257 = sbr.rel (%p255) target = $region44
        $region43: #{tpu_custom_call.1} parent=39 // pred_region
          %s258 = sand.u32 %s30, 1
          %s259 = scalar_lea.sflag [#allocation3], %s258
          %s260 = sand.u32 %s30, 1
          %s261 = smul.addr %s260, 32
          %s262 = scalar_lea.vmem [#allocation2], %s261
          %s263 = smul.u32 2, %s20
          %s265 = ssub.s32 512, 512
          %266 = vsyncadd %s259, %s265
          %s267 = smul.addr %s263, 2
          %s268 = smul.addr %s267, 128
          %s269 = scalar_lea.hbm %s0, %s268
          %s270 = sshll.u32 %s262, 4
          %s271 = int_to_ptr.vmem [resolvable:$true] %s270
          %276 = dma.hbm_to_vmem [thread:$0]  %s269, 512, %s271, %s259, 128, 128, 8
        $region44: #{tpu_custom_call.1} parent=39 // pred_fallthru
          _
      $region40: #{tpu_custom_call.1} parent=5 // pred_fallthru
        _
      %p277 = scmp.le.s32.totalorder 1, %s20
      %p278 = scmp.lt.s32.totalorder %s20, 5
      %p279 = pnand %p277, %p278
      %p280 = pneg %p279
      // Predicated region
      $region45: #{tpu_custom_call.1} parent=5 // pred_check
        _
      $region46: #{tpu_custom_call.1} parent=5 // pred_check_branch
        %282 = sbr.rel (%p279) target = $region48
      $region47: #{tpu_custom_call.1} parent=5 // pred_region
        %s283 = ssub.s32 %s20, 1
        %s284 = sand.u32 %s33, 1
        %s285 = scalar_lea.sflag [#allocation3], %s284
        %s286 = sand.u32 %s33, 1
        %s287 = smul.addr %s286, 32
        %s288 = scalar_lea.vmem [#allocation2], %s287
        // Predicated region
        $region49: #{tpu_custom_call.1} parent=47 // pred_check
          %p289 = pneg %p46
        $region50: #{tpu_custom_call.1} parent=47 // pred_check_branch
          %291 = sbr.rel (%p289) target = $region52
        $region51: #{tpu_custom_call.1} parent=47 // pred_region
          %292 = dma.done %s285, 512
        $region52: #{tpu_custom_call.1} parent=47 // pred_fallthru
          _
        // Predicated region
        $region53: #{tpu_custom_call.1} parent=47 // pred_check
          %p293 = pneg %p67
        $region54: #{tpu_custom_call.1} parent=47 // pred_check_branch
          %295 = sbr.rel (%p293) target = $region56
        $region55: #{tpu_custom_call.1} parent=47 // pred_region
          %296 = dma.done [#allocation6], 6144
        $region56: #{tpu_custom_call.1} parent=47 // pred_fallthru
          _
        // Predicated region
        $region57: #{tpu_custom_call.1} parent=47 // pred_check
          %p297 = pneg %p130
        $region58: #{tpu_custom_call.1} parent=47 // pred_check_branch
          %299 = sbr.rel (%p297) target = $region60
        $region59: #{tpu_custom_call.1} parent=47 // pred_region
          %300 = dma.done [#allocation6], 6144
        $region60: #{tpu_custom_call.1} parent=47 // pred_fallthru
          _
        %s301 = sand.u32 %s33, 1
        %s302 = scalar_lea.sflag [#allocation3], %s301
        %s303 = sand.u32 %s33, 1
        %s304 = smul.addr %s303, 32
        %s305 = scalar_lea.vmem [#allocation2], %s304
        %p306 = pneg %p46
        %p307 = pneg %p43
        %p308 = pneg %p67
        %p309 = pneg %p64
        %p310 = pneg %p88
        %p311 = pneg %p85
        %p312 = pneg %p109
        %p313 = pneg %p106
        %p314 = pneg %p130
        %p315 = pneg %p127
        %p316 = pneg %p151
        %p317 = pneg %p148
        %p318 = pneg %p172
        %p319 = pneg %p169
        %p320 = pneg %p198
        %p321 = pneg %p195
        %s322 = sand.u32 %s185, 1
        %s323 = scalar_lea.sflag [#allocation4], %s322
        %s324 = sand.u32 %s185, 1
        %s325 = smul.addr %s324, 32
        %s326 = scalar_lea.vmem [#allocation8], %s325
        %s327 = smul.u32 2, %s25
        %s328 = smul.u32 2, %s25
        %v329 = vld [vmem:[%s288] sm:$0xff]
        %v330 = vld [vmem:[%s288 + $0x8] sm:$0xff]
        %v331 = vld [vmem:[%s288 + $0x10] sm:$0xff]
        %v332 = vld [vmem:[%s288 + $0x18] sm:$0xff]
        %v333 = vld [vmem:[#allocation5] sm:$0xff]
        %v334 = vld [vmem:[#allocation5 + $0x8] sm:$0xff]
        %v335 = vld [vmem:[#allocation5 + $0x10] sm:$0xff]
        %v336 = vld [vmem:[#allocation5 + $0x18] sm:$0xff]
        %v337 = vld [vmem:[#allocation5 + $0x20] sm:$0xff]
        %v338 = vld [vmem:[#allocation5 + $0x28] sm:$0xff]
        %v339 = vld [vmem:[#allocation5 + $0x30] sm:$0xff]
        %v340 = vld [vmem:[#allocation5 + $0x38] sm:$0xff]
        %v341 = vld [vmem:[#allocation5 + $0x40] sm:$0xff]
        %v342 = vld [vmem:[#allocation5 + $0x48] sm:$0xff]
        %v343 = vld [vmem:[#allocation5 + $0x50] sm:$0xff]
        %v344 = vld [vmem:[#allocation5 + $0x58] sm:$0xff]
        %v345 = vld [vmem:[#allocation5 + $0x60] sm:$0xff]
        %v346 = vld [vmem:[#allocation5 + $0x68] sm:$0xff]
        %v347 = vld [vmem:[#allocation5 + $0x70] sm:$0xff]
        %v348 = vld [vmem:[#allocation5 + $0x78] sm:$0xff]
        %v349 = vld [vmem:[#allocation5 + $0x80] sm:$0xff]
        %v350 = vld [vmem:[#allocation5 + $0x88] sm:$0xff]
        %v351 = vld [vmem:[#allocation5 + $0x90] sm:$0xff]
        %v352 = vld [vmem:[#allocation5 + $0x98] sm:$0xff]
        %v353 = vld [vmem:[#allocation5 + $0xa0] sm:$0xff]
        %v354 = vld [vmem:[#allocation5 + $0xa8] sm:$0xff]
        %v355 = vld [vmem:[#allocation5 + $0xb0] sm:$0xff]
        %v356 = vld [vmem:[#allocation5 + $0xb8] sm:$0xff]
        %v357 = vld [vmem:[#allocation5 + $0xc0] sm:$0xff]
        %v358 = vld [vmem:[#allocation5 + $0xc8] sm:$0xff]
        %v359 = vld [vmem:[#allocation5 + $0xd0] sm:$0xff]
        %v360 = vld [vmem:[#allocation5 + $0xd8] sm:$0xff]
        %v361 = vld [vmem:[#allocation5 + $0xe0] sm:$0xff]
        %v362 = vld [vmem:[#allocation5 + $0xe8] sm:$0xff]
        %v363 = vld [vmem:[#allocation5 + $0xf0] sm:$0xff]
        %v364 = vld [vmem:[#allocation5 + $0xf8] sm:$0xff]
        %v365 = vld [vmem:[#allocation5 + $0x100] sm:$0xff]
        %v366 = vld [vmem:[#allocation5 + $0x108] sm:$0xff]
        %v367 = vld [vmem:[#allocation5 + $0x110] sm:$0xff]
        %v368 = vld [vmem:[#allocation5 + $0x118] sm:$0xff]
        %v369 = vld [vmem:[#allocation5 + $0x120] sm:$0xff]
        %v370 = vld [vmem:[#allocation5 + $0x128] sm:$0xff]
        %v371 = vld [vmem:[#allocation5 + $0x130] sm:$0xff]
        %v372 = vld [vmem:[#allocation5 + $0x138] sm:$0xff]
        %v373 = vld [vmem:[#allocation5 + $0x140] sm:$0xff]
        %v374 = vld [vmem:[#allocation5 + $0x148] sm:$0xff]
        %v375 = vld [vmem:[#allocation5 + $0x150] sm:$0xff]
        %v376 = vld [vmem:[#allocation5 + $0x158] sm:$0xff]
        %v377 = vld [vmem:[#allocation5 + $0x160] sm:$0xff]
        %v378 = vld [vmem:[#allocation5 + $0x168] sm:$0xff]
        %v379 = vld [vmem:[#allocation5 + $0x170] sm:$0xff]
        %v380 = vld [vmem:[#allocation5 + $0x178] sm:$0xff]
        %381 = vmatprep.subr.mxu0 %v334
        %382 = vmatpush1.msra.mxu0 %v333
        %383 = vmatprep.subr.mxu0 %v337
        %384 = vmatpush1.msra.mxu0 %v336
        %385 = vmatprep.subr.mxu0 %v340
        %386 = vmatpush1.msra.mxu0 %v339
        %387 = vmatprep.subr.mxu0 %v343
        %388 = vmatpush1.msra.mxu0 %v342
        %389 = vmatprep.subr.mxu0 %v346
        %390 = vmatpush1.msra.mxu0 %v345
        %391 = vmatprep.subr.mxu0 %v349
        %392 = vmatpush1.msra.mxu0 %v348
        %393 = vmatprep.subr.mxu0 %v352
        %394 = vmatpush1.msra.mxu0 %v351
        %395 = vmatprep.subr.mxu0 %v355
        %396 = vmatpush1.msra.mxu0 %v354
        %397 = vmatprep.subr.mxu0 %v358
        %398 = vmatpush1.msra.mxu0 %v357
        %399 = vmatprep.subr.mxu0 %v361
        %400 = vmatpush1.msra.mxu0 %v360
        %401 = vmatprep.subr.mxu0 %v364
        %402 = vmatpush1.msra.mxu0 %v363
        %403 = vmatprep.subr.mxu0 %v367
        %404 = vmatpush1.msra.mxu0 %v366
        %405 = vmatprep.subr.mxu0 %v370
        %406 = vmatpush1.msra.mxu0 %v369
        %407 = vmatprep.subr.mxu0 %v373
        %408 = vmatpush1.msra.mxu0 %v372
        %409 = vmatprep.subr.mxu0 %v376
        %410 = vmatpush1.msra.mxu0 %v375
        %411 = vmatprep.subr.mxu0 %v379
        %412 = vmatpush1.msra.mxu0 %v378
        %413 = vmatprep.subr.mxu0 0.0
        %414 = vmatpush1.msra.mxu0 0.0
        %415 = vmatprep.subr.mxu0 0.0
        %416 = vmatpush1.msra.mxu0 0.0
        %417 = vmatprep.subr.mxu0 0.0
        %418 = vmatpush1.msra.mxu0 0.0
        %419 = vmatprep.subr.mxu0 0.0
        %420 = vmatpush1.msra.mxu0 0.0
        %421 = vmatprep.subr.mxu0 0.0
        %422 = vmatpush1.msra.mxu0 0.0
        %423 = vmatprep.subr.mxu0 0.0
        %424 = vmatpush1.msra.mxu0 0.0
        %425 = vmatprep.subr.mxu0 0.0
        %426 = vmatpush1.msra.mxu0 0.0
        %427 = vmatprep.subr.mxu0 0.0
        %428 = vmatpush1.msra.mxu0 0.0
        %429 = vmatprep.subr.mxu0 0.0
        %430 = vmatpush1.msra.mxu0 0.0
        %431 = vmatprep.subr.mxu0 0.0
        %432 = vmatpush1.msra.mxu0 0.0
        %433 = vmatprep.subr.mxu0 0.0
        %434 = vmatpush1.msra.mxu0 0.0
        %435 = vmatprep.subr.mxu0 0.0
        %436 = vmatpush1.msra.mxu0 0.0
        %437 = vmatprep.subr.mxu0 0.0
        %438 = vmatpush1.msra.mxu0 0.0
        %439 = vmatprep.subr.mxu0 0.0
        %440 = vmatpush1.msra.mxu0 0.0
        %441 = vmatprep.subr.mxu0 0.0
        %442 = vmatpush1.msra.mxu0 0.0
        %443 = vmatprep.subr.mxu0 0.0
        %444 = vmatpush1.msra.mxu0 0.0
        %445 = vmatprep.mubr.f32.mxu0 0.0
        %446 = vmatmul.mubr.f32.gmra.mrb[0].mxu0 %v329
        %v447 = vpop.f32.mrb[0].mxu0
        %v448 = vadd.f32 0.0, %v447
        %v449 = vpop.f32.mrb[0].mxu0
        %v450 = vadd.f32 0.0, %v449
        %451 = vmatprep.mubr.f32.mxu0 0.0
        %452 = vmatmul.mubr.f32.gmra.mrb[0].mxu0 %v330
        %v453 = vpop.f32.mrb[0].mxu0
        %v454 = vadd.f32 0.0, %v453
        %v455 = vpop.f32.mrb[0].mxu0
        %v456 = vadd.f32 0.0, %v455
        %457 = vmatprep.mubr.f32.mxu0 0.0
        %458 = vmatmul.mubr.f32.gmra.mrb[0].mxu0 %v331
        %v459 = vpop.f32.mrb[0].mxu0
        %v460 = vadd.f32 0.0, %v459
        %v461 = vpop.f32.mrb[0].mxu0
        %v462 = vadd.f32 0.0, %v461
        %463 = vmatprep.mubr.f32.mxu0 0.0
        %464 = vmatmul.mubr.f32.gmra.mrb[0].mxu0 %v332
        %v465 = vpop.f32.mrb[0].mxu0
        %v466 = vadd.f32 0.0, %v465
        %v467 = vpop.f32.mrb[0].mxu0
        %v468 = vadd.f32 0.0, %v467
        %469 = vdwg.mxu0
        %470 = vmatprep.subr.mxu0 0.0
        %471 = vmatpush1.msra.mxu0 %v335
        %472 = vmatprep.subr.mxu0 0.0
        %473 = vmatpush1.msra.mxu0 %v338
        %474 = vmatprep.subr.mxu0 0.0
        %475 = vmatpush1.msra.mxu0 %v341
        %476 = vmatprep.subr.mxu0 0.0
        %477 = vmatpush1.msra.mxu0 %v344
        %478 = vmatprep.subr.mxu0 0.0
        %479 = vmatpush1.msra.mxu0 %v347
        %480 = vmatprep.subr.mxu0 0.0
        %481 = vmatpush1.msra.mxu0 %v350
        %482 = vmatprep.subr.mxu0 0.0
        %483 = vmatpush1.msra.mxu0 %v353
        %484 = vmatprep.subr.mxu0 0.0
        %485 = vmatpush1.msra.mxu0 %v356
        %486 = vmatprep.subr.mxu0 0.0
        %487 = vmatpush1.msra.mxu0 %v359
        %488 = vmatprep.subr.mxu0 0.0
        %489 = vmatpush1.msra.mxu0 %v362
        %490 = vmatprep.subr.mxu0 0.0
        %491 = vmatpush1.msra.mxu0 %v365
        %492 = vmatprep.subr.mxu0 0.0
        %493 = vmatpush1.msra.mxu0 %v368
        %494 = vmatprep.subr.mxu0 0.0
        %495 = vmatpush1.msra.mxu0 %v371
        %496 = vmatprep.subr.mxu0 0.0
        %497 = vmatpush1.msra.mxu0 %v374
        %498 = vmatprep.subr.mxu0 0.0
        %499 = vmatpush1.msra.mxu0 %v377
        %500 = vmatprep.subr.mxu0 0.0
        %501 = vmatpush1.msra.mxu0 %v380
        %502 = vmatprep.subr.mxu0 0.0
        %503 = vmatpush1.msra.mxu0 0.0
        %504 = vmatprep.subr.mxu0 0.0
        %505 = vmatpush1.msra.mxu0 0.0
        %506 = vmatprep.subr.mxu0 0.0
        %507 = vmatpush1.msra.mxu0 0.0
        %508 = vmatprep.subr.mxu0 0.0
        %509 = vmatpush1.msra.mxu0 0.0
        %510 = vmatprep.subr.mxu0 0.0
        %511 = vmatpush1.msra.mxu0 0.0
        %512 = vmatprep.subr.mxu0 0.0
        %513 = vmatpush1.msra.mxu0 0.0
        %514 = vmatprep.subr.mxu0 0.0
        %515 = vmatpush1.msra.mxu0 0.0
        %516 = vmatprep.subr.mxu0 0.0
        %517 = vmatpush1.msra.mxu0 0.0
        %518 = vmatprep.subr.mxu0 0.0
        %519 = vmatpush1.msra.mxu0 0.0
        %520 = vmatprep.subr.mxu0 0.0
        %521 = vmatpush1.msra.mxu0 0.0
        %522 = vmatprep.subr.mxu0 0.0
        %523 = vmatpush1.msra.mxu0 0.0
        %524 = vmatprep.subr.mxu0 0.0
        %525 = vmatpush1.msra.mxu0 0.0
        %526 = vmatprep.subr.mxu0 0.0
        %527 = vmatpush1.msra.mxu0 0.0
        %528 = vmatprep.subr.mxu0 0.0
        %529 = vmatpush1.msra.mxu0 0.0
        %530 = vmatprep.subr.mxu0 0.0
        %531 = vmatpush1.msra.mxu0 0.0
        %532 = vmatprep.subr.mxu0 0.0
        %533 = vmatpush1.msra.mxu0 0.0
        %534 = vmatprep.mubr.f32.mxu0 0.0
        %535 = vmatmul.mubr.f32.gmra.mrb[0].mxu0 %v329
        %v536 = vpop.f32.mrb[0].mxu0
        %v537 = vadd.f32 0.0, %v536
        %v538 = vpop.f32.mrb[0].mxu0
        %539 = vmatprep.mubr.f32.mxu0 0.0
        %540 = vmatmul.mubr.f32.gmra.mrb[0].mxu0 %v330
        %v541 = vpop.f32.mrb[0].mxu0
        %v542 = vadd.f32 0.0, %v541
        %v543 = vpop.f32.mrb[0].mxu0
        %544 = vmatprep.mubr.f32.mxu0 0.0
        %545 = vmatmul.mubr.f32.gmra.mrb[0].mxu0 %v331
        %v546 = vpop.f32.mrb[0].mxu0
        %v547 = vadd.f32 0.0, %v546
        %v548 = vpop.f32.mrb[0].mxu0
        %549 = vmatprep.mubr.f32.mxu0 0.0
        %550 = vmatmul.mubr.f32.gmra.mrb[0].mxu0 %v332
        %v551 = vpop.f32.mrb[0].mxu0
        %v552 = vadd.f32 0.0, %v551
        %v553 = vpop.f32.mrb[0].mxu0
        %554 = vdwg.mxu0
        %vm559 = vcmask 1040384
        %v560 = vrot.slane %v448, 7
        %v561 = vrot.slane %v454, 7
        %v562 = vsel %vm559, %v560, %v561
        %v563 = vrot.slane %v460, 7
        %v564 = vrot.slane %v466, 7
        %v565 = vsel %vm559, %v563, %v564
        %v570 = vsel %vm559, 0.0, %v560
        %v571 = vsel %vm559, 0.0, %v563
        %vm576 = vcmask 1046528
        %v577 = vrot.slane %v537, 1
        %v578 = vrot.slane %v542, 1
        %v579 = vsel %vm576, %v577, %v578
        %v580 = vrot.slane %v547, 1
        %v581 = vrot.slane %v552, 1
        %v582 = vsel %vm576, %v580, %v581
        %v587 = vsel %vm576, %v578, 0.0
        %v588 = vsel %vm576, %v581, 0.0
        %v589 = vadd.f32 %v450, %v570
        %v590 = vadd.f32 %v456, %v562
        %v591 = vadd.f32 %v462, %v571
        %v592 = vadd.f32 %v468, %v565
        %v593 = vadd.f32 %v589, %v579
        %v594 = vadd.f32 %v590, %v587
        %v595 = vadd.f32 %v591, %v582
        %v596 = vadd.f32 %v592, %v588
        %v597 = vld [vmem:[%s2] sm:$0x1]
        %v599 = vlaneseq
        %v600 = vshrl.u32 %v599, 7
        %v601 = vsub.s32 0, %v600
        %v602 = vrot.slane %v597, %v601
        %v604 = vmul.f32 %v593, %v602
        %v605 = vmul.f32 %v594, %v602
        %v606 = vmul.f32 %v595, %v602
        %v607 = vmul.f32 %v596, %v602
        %v608 = vld [vmem:[%s3] sm:$0x1]
        %v610 = vlaneseq
        %v611 = vshrl.u32 %v610, 7
        %v612 = vsub.s32 0, %v611
        %v613 = vrot.slane %v608, %v612
        %v615 = vadd.f32 %v604, %v613
        %v616 = vadd.f32 %v605, %v613
        %v617 = vadd.f32 %v606, %v613
        %v618 = vadd.f32 %v607, %v613
        %v619 = vmax.f32 %v615, 0.0
        %v620 = vmax.f32 %v616, 0.0
        %v621 = vmax.f32 %v617, 0.0
        %v622 = vmax.f32 %v618, 0.0
        %v623 = vld [vmem:[#allocation7] sm:$0xff]
        %v624 = vld [vmem:[#allocation7 + $0x8] sm:$0xff]
        %v625 = vld [vmem:[#allocation7 + $0x10] sm:$0xff]
        %v626 = vld [vmem:[#allocation7 + $0x18] sm:$0xff]
        %v627 = vld [vmem:[#allocation7 + $0x20] sm:$0xff]
        %v628 = vld [vmem:[#allocation7 + $0x28] sm:$0xff]
        %v629 = vld [vmem:[#allocation7 + $0x30] sm:$0xff]
        %v630 = vld [vmem:[#allocation7 + $0x38] sm:$0xff]
        %v631 = vld [vmem:[#allocation7 + $0x40] sm:$0xff]
        %v632 = vld [vmem:[#allocation7 + $0x48] sm:$0xff]
        %v633 = vld [vmem:[#allocation7 + $0x50] sm:$0xff]
        %v634 = vld [vmem:[#allocation7 + $0x58] sm:$0xff]
        %v635 = vld [vmem:[#allocation7 + $0x60] sm:$0xff]
        %v636 = vld [vmem:[#allocation7 + $0x68] sm:$0xff]
        %v637 = vld [vmem:[#allocation7 + $0x70] sm:$0xff]
        %v638 = vld [vmem:[#allocation7 + $0x78] sm:$0xff]
        %v639 = vld [vmem:[#allocation7 + $0x80] sm:$0xff]
        %v640 = vld [vmem:[#allocation7 + $0x88] sm:$0xff]
        %v641 = vld [vmem:[#allocation7 + $0x90] sm:$0xff]
        %v642 = vld [vmem:[#allocation7 + $0x98] sm:$0xff]
        %v643 = vld [vmem:[#allocation7 + $0xa0] sm:$0xff]
        %v644 = vld [vmem:[#allocation7 + $0xa8] sm:$0xff]
        %v645 = vld [vmem:[#allocation7 + $0xb0] sm:$0xff]
        %v646 = vld [vmem:[#allocation7 + $0xb8] sm:$0xff]
        %v647 = vld [vmem:[#allocation7 + $0xc0] sm:$0xff]
        %v648 = vld [vmem:[#allocation7 + $0xc8] sm:$0xff]
        %v649 = vld [vmem:[#allocation7 + $0xd0] sm:$0xff]
        %v650 = vld [vmem:[#allocation7 + $0xd8] sm:$0xff]
        %v651 = vld [vmem:[#allocation7 + $0xe0] sm:$0xff]
        %v652 = vld [vmem:[#allocation7 + $0xe8] sm:$0xff]
        %v653 = vld [vmem:[#allocation7 + $0xf0] sm:$0xff]
        %v654 = vld [vmem:[#allocation7 + $0xf8] sm:$0xff]
        %v655 = vld [vmem:[#allocation7 + $0x100] sm:$0xff]
        %v656 = vld [vmem:[#allocation7 + $0x108] sm:$0xff]
        %v657 = vld [vmem:[#allocation7 + $0x110] sm:$0xff]
        %v658 = vld [vmem:[#allocation7 + $0x118] sm:$0xff]
        %v659 = vld [vmem:[#allocation7 + $0x120] sm:$0xff]
        %v660 = vld [vmem:[#allocation7 + $0x128] sm:$0xff]
        %v661 = vld [vmem:[#allocation7 + $0x130] sm:$0xff]
        %v662 = vld [vmem:[#allocation7 + $0x138] sm:$0xff]
        %v663 = vld [vmem:[#allocation7 + $0x140] sm:$0xff]
        %v664 = vld [vmem:[#allocation7 + $0x148] sm:$0xff]
        %v665 = vld [vmem:[#allocation7 + $0x150] sm:$0xff]
        %v666 = vld [vmem:[#allocation7 + $0x158] sm:$0xff]
        %v667 = vld [vmem:[#allocation7 + $0x160] sm:$0xff]
        %v668 = vld [vmem:[#allocation7 + $0x168] sm:$0xff]
        %v669 = vld [vmem:[#allocation7 + $0x170] sm:$0xff]
        %v670 = vld [vmem:[#allocation7 + $0x178] sm:$0xff]
        %671 = vmatprep.subr.mxu0 %v624
        %672 = vmatpush1.msra.mxu0 %v623
        %673 = vmatprep.subr.mxu0 %v627
        %674 = vmatpush1.msra.mxu0 %v626
        %675 = vmatprep.subr.mxu0 %v630
        %676 = vmatpush1.msra.mxu0 %v629
        %677 = vmatprep.subr.mxu0 %v633
        %678 = vmatpush1.msra.mxu0 %v632
        %679 = vmatprep.subr.mxu0 %v636
        %680 = vmatpush1.msra.mxu0 %v635
        %681 = vmatprep.subr.mxu0 %v639
        %682 = vmatpush1.msra.mxu0 %v638
        %683 = vmatprep.subr.mxu0 %v642
        %684 = vmatpush1.msra.mxu0 %v641
        %685 = vmatprep.subr.mxu0 %v645
        %686 = vmatpush1.msra.mxu0 %v644
        %687 = vmatprep.subr.mxu0 %v648
        %688 = vmatpush1.msra.mxu0 %v647
        %689 = vmatprep.subr.mxu0 %v651
        %690 = vmatpush1.msra.mxu0 %v650
        %691 = vmatprep.subr.mxu0 %v654
        %692 = vmatpush1.msra.mxu0 %v653
        %693 = vmatprep.subr.mxu0 %v657
        %694 = vmatpush1.msra.mxu0 %v656
        %695 = vmatprep.subr.mxu0 %v660
        %696 = vmatpush1.msra.mxu0 %v659
        %697 = vmatprep.subr.mxu0 %v663
        %698 = vmatpush1.msra.mxu0 %v662
        %699 = vmatprep.subr.mxu0 %v666
        %700 = vmatpush1.msra.mxu0 %v665
        %701 = vmatprep.subr.mxu0 %v669
        %702 = vmatpush1.msra.mxu0 %v668
        %703 = vmatprep.subr.mxu0 0.0
        %704 = vmatpush1.msra.mxu0 0.0
        %705 = vmatprep.subr.mxu0 0.0
        %706 = vmatpush1.msra.mxu0 0.0
        %707 = vmatprep.subr.mxu0 0.0
        %708 = vmatpush1.msra.mxu0 0.0
        %709 = vmatprep.subr.mxu0 0.0
        %710 = vmatpush1.msra.mxu0 0.0
        %711 = vmatprep.subr.mxu0 0.0
        %712 = vmatpush1.msra.mxu0 0.0
        %713 = vmatprep.subr.mxu0 0.0
        %714 = vmatpush1.msra.mxu0 0.0
        %715 = vmatprep.subr.mxu0 0.0
        %716 = vmatpush1.msra.mxu0 0.0
        %717 = vmatprep.subr.mxu0 0.0
        %718 = vmatpush1.msra.mxu0 0.0
        %719 = vmatprep.subr.mxu0 0.0
        %720 = vmatpush1.msra.mxu0 0.0
        %721 = vmatprep.subr.mxu0 0.0
        %722 = vmatpush1.msra.mxu0 0.0
        %723 = vmatprep.subr.mxu0 0.0
        %724 = vmatpush1.msra.mxu0 0.0
        %725 = vmatprep.subr.mxu0 0.0
        %726 = vmatpush1.msra.mxu0 0.0
        %727 = vmatprep.subr.mxu0 0.0
        %728 = vmatpush1.msra.mxu0 0.0
        %729 = vmatprep.subr.mxu0 0.0
        %730 = vmatpush1.msra.mxu0 0.0
        %731 = vmatprep.subr.mxu0 0.0
        %732 = vmatpush1.msra.mxu0 0.0
        %733 = vmatprep.subr.mxu0 0.0
        %734 = vmatpush1.msra.mxu0 0.0
        %735 = vmatprep.mubr.f32.mxu0 0.0
        %736 = vmatmul.mubr.f32.gmra.mrb[0].mxu0 %v619
        %v737 = vpop.f32.mrb[0].mxu0
        %v738 = vadd.f32 0.0, %v737
        %v739 = vpop.f32.mrb[0].mxu0
        %v740 = vadd.f32 0.0, %v739
        %741 = vmatprep.mubr.f32.mxu0 0.0
        %742 = vmatmul.mubr.f32.gmra.mrb[0].mxu0 %v620
        %v743 = vpop.f32.mrb[0].mxu0
        %v744 = vadd.f32 0.0, %v743
        %v745 = vpop.f32.mrb[0].mxu0
        %v746 = vadd.f32 0.0, %v745
        %747 = vmatprep.mubr.f32.mxu0 0.0
        %748 = vmatmul.mubr.f32.gmra.mrb[0].mxu0 %v621
        %v749 = vpop.f32.mrb[0].mxu0
        %v750 = vadd.f32 0.0, %v749
        %v751 = vpop.f32.mrb[0].mxu0
        %v752 = vadd.f32 0.0, %v751
        %753 = vmatprep.mubr.f32.mxu0 0.0
        %754 = vmatmul.mubr.f32.gmra.mrb[0].mxu0 %v622
        %v755 = vpop.f32.mrb[0].mxu0
        %v756 = vadd.f32 0.0, %v755
        %v757 = vpop.f32.mrb[0].mxu0
        %v758 = vadd.f32 0.0, %v757
        %759 = vdwg.mxu0
        %760 = vmatprep.subr.mxu0 0.0
        %761 = vmatpush1.msra.mxu0 %v625
        %762 = vmatprep.subr.mxu0 0.0
        %763 = vmatpush1.msra.mxu0 %v628
        %764 = vmatprep.subr.mxu0 0.0
        %765 = vmatpush1.msra.mxu0 %v631
        %766 = vmatprep.subr.mxu0 0.0
        %767 = vmatpush1.msra.mxu0 %v634
        %768 = vmatprep.subr.mxu0 0.0
        %769 = vmatpush1.msra.mxu0 %v637
        %770 = vmatprep.subr.mxu0 0.0
        %771 = vmatpush1.msra.mxu0 %v640
        %772 = vmatprep.subr.mxu0 0.0
        %773 = vmatpush1.msra.mxu0 %v643
        %774 = vmatprep.subr.mxu0 0.0
        %775 = vmatpush1.msra.mxu0 %v646
        %776 = vmatprep.subr.mxu0 0.0
        %777 = vmatpush1.msra.mxu0 %v649
        %778 = vmatprep.subr.mxu0 0.0
        %779 = vmatpush1.msra.mxu0 %v652
        %780 = vmatprep.subr.mxu0 0.0
        %781 = vmatpush1.msra.mxu0 %v655
        %782 = vmatprep.subr.mxu0 0.0
        %783 = vmatpush1.msra.mxu0 %v658
        %784 = vmatprep.subr.mxu0 0.0
        %785 = vmatpush1.msra.mxu0 %v661
        %786 = vmatprep.subr.mxu0 0.0
        %787 = vmatpush1.msra.mxu0 %v664
        %788 = vmatprep.subr.mxu0 0.0
        %789 = vmatpush1.msra.mxu0 %v667
        %790 = vmatprep.subr.mxu0 0.0
        %791 = vmatpush1.msra.mxu0 %v670
        %792 = vmatprep.subr.mxu0 0.0
        %793 = vmatpush1.msra.mxu0 0.0
        %794 = vmatprep.subr.mxu0 0.0
        %795 = vmatpush1.msra.mxu0 0.0
        %796 = vmatprep.subr.mxu0 0.0
        %797 = vmatpush1.msra.mxu0 0.0
        %798 = vmatprep.subr.mxu0 0.0
        %799 = vmatpush1.msra.mxu0 0.0
        %800 = vmatprep.subr.mxu0 0.0
        %801 = vmatpush1.msra.mxu0 0.0
        %802 = vmatprep.subr.mxu0 0.0
        %803 = vmatpush1.msra.mxu0 0.0
        %804 = vmatprep.subr.mxu0 0.0
        %805 = vmatpush1.msra.mxu0 0.0
        %806 = vmatprep.subr.mxu0 0.0
        %807 = vmatpush1.msra.mxu0 0.0
        %808 = vmatprep.subr.mxu0 0.0
        %809 = vmatpush1.msra.mxu0 0.0
        %810 = vmatprep.subr.mxu0 0.0
        %811 = vmatpush1.msra.mxu0 0.0
        %812 = vmatprep.subr.mxu0 0.0
        %813 = vmatpush1.msra.mxu0 0.0
        %814 = vmatprep.subr.mxu0 0.0
        %815 = vmatpush1.msra.mxu0 0.0
        %816 = vmatprep.subr.mxu0 0.0
        %817 = vmatpush1.msra.mxu0 0.0
        %818 = vmatprep.subr.mxu0 0.0
        %819 = vmatpush1.msra.mxu0 0.0
        %820 = vmatprep.subr.mxu0 0.0
        %821 = vmatpush1.msra.mxu0 0.0
        %822 = vmatprep.subr.mxu0 0.0
        %823 = vmatpush1.msra.mxu0 0.0
        %824 = vmatprep.mubr.f32.mxu0 0.0
        %825 = vmatmul.mubr.f32.gmra.mrb[0].mxu0 %v619
        %v826 = vpop.f32.mrb[0].mxu0
        %v827 = vadd.f32 0.0, %v826
        %v828 = vpop.f32.mrb[0].mxu0
        %829 = vmatprep.mubr.f32.mxu0 0.0
        %830 = vmatmul.mubr.f32.gmra.mrb[0].mxu0 %v620
        %v831 = vpop.f32.mrb[0].mxu0
        %v832 = vadd.f32 0.0, %v831
        %v833 = vpop.f32.mrb[0].mxu0
        %834 = vmatprep.mubr.f32.mxu0 0.0
        %835 = vmatmul.mubr.f32.gmra.mrb[0].mxu0 %v621
        %v836 = vpop.f32.mrb[0].mxu0
        %v837 = vadd.f32 0.0, %v836
        %v838 = vpop.f32.mrb[0].mxu0
        %839 = vmatprep.mubr.f32.mxu0 0.0
        %840 = vmatmul.mubr.f32.gmra.mrb[0].mxu0 %v622
        %v841 = vpop.f32.mrb[0].mxu0
        %v842 = vadd.f32 0.0, %v841
        %v843 = vpop.f32.mrb[0].mxu0
        %844 = vdwg.mxu0
        %v849 = vrot.slane %v738, 7
        %v850 = vrot.slane %v744, 7
        %v851 = vsel %vm559, %v849, %v850
        %v852 = vrot.slane %v750, 7
        %v853 = vrot.slane %v756, 7
        %v854 = vsel %vm559, %v852, %v853
        %v859 = vsel %vm559, 0.0, %v849
        %v860 = vsel %vm559, 0.0, %v852
        %v865 = vrot.slane %v827, 1
        %v866 = vrot.slane %v832, 1
        %v867 = vsel %vm576, %v865, %v866
        %v868 = vrot.slane %v837, 1
        %v869 = vrot.slane %v842, 1
        %v870 = vsel %vm576, %v868, %v869
        %v875 = vsel %vm576, %v866, 0.0
        %v876 = vsel %vm576, %v869, 0.0
        %v877 = vadd.f32 %v740, %v859
        %v878 = vadd.f32 %v746, %v851
        %v879 = vadd.f32 %v752, %v860
        %v880 = vadd.f32 %v758, %v854
        %v881 = vadd.f32 %v877, %v867
        %v882 = vadd.f32 %v878, %v875
        %v883 = vadd.f32 %v879, %v870
        %v884 = vadd.f32 %v880, %v876
        %v885 = vld [vmem:[%s5] sm:$0x1]
        %v887 = vlaneseq
        %v888 = vshrl.u32 %v887, 7
        %v889 = vsub.s32 0, %v888
        %v890 = vrot.slane %v885, %v889
        %v892 = vmul.f32 %v881, %v890
        %v893 = vmul.f32 %v882, %v890
        %v894 = vmul.f32 %v883, %v890
        %v895 = vmul.f32 %v884, %v890
        %v896 = vld [vmem:[%s6] sm:$0x1]
        %v898 = vlaneseq
        %v899 = vshrl.u32 %v898, 7
        %v900 = vsub.s32 0, %v899
        %v901 = vrot.slane %v896, %v900
        %v903 = vadd.f32 %v892, %v901
        %v904 = vadd.f32 %v893, %v901
        %v905 = vadd.f32 %v894, %v901
        %v906 = vadd.f32 %v895, %v901
        %v907 = vadd.f32 %v903, %v329
        %v908 = vadd.f32 %v904, %v330
        %v909 = vadd.f32 %v905, %v331
        %v910 = vadd.f32 %v906, %v332
        %v911 = vmax.f32 %v907, 0.0
        %v912 = vmax.f32 %v908, 0.0
        %v913 = vmax.f32 %v909, 0.0
        %v914 = vmax.f32 %v910, 0.0
        %915 = vst [vmem:[%s326] sm:$0xff] %v911
        %916 = vst [vmem:[%s326 + $0x8] sm:$0xff] %v912
        %917 = vst [vmem:[%s326 + $0x10] sm:$0xff] %v913
        %918 = vst [vmem:[%s326 + $0x18] sm:$0xff] %v914
        %s919 = sand.u32 %s185, 1
        %s920 = scalar_lea.sflag [#allocation4], %s919
        %s921 = sand.u32 %s185, 1
        %s922 = smul.addr %s921, 32
        %s923 = scalar_lea.vmem [#allocation8], %s922
        // Predicated region
        $region61: #{tpu_custom_call.1} parent=47 // pred_check
          %p924 = pneg %p195
        $region62: #{tpu_custom_call.1} parent=47 // pred_check_branch
          %926 = sbr.rel (%p924) target = $region64
        $region63: #{tpu_custom_call.1} parent=47 // pred_region
          %s927 = smul.u32 2, %s25
          %s929 = ssub.s32 512, 512
          %930 = vsyncadd %s920, %s929
          %s931 = smul.addr %s927, 2
          %s932 = smul.addr %s931, 128
          %s933 = scalar_lea.hbm %s7, %s932
          %s934 = sshll.u32 %s923, 4
          %s935 = int_to_ptr.vmem [resolvable:$true] %s934
          %940 = dma.vmem_to_hbm [thread:$0]  %s935, 512, %s933, %s920, 128, 128, 8
        $region64: #{tpu_custom_call.1} parent=47 // pred_fallthru
          _
      $region48: #{tpu_custom_call.1} parent=5 // pred_fallthru
        _
      %p941 = scmp.le.s32.totalorder 2, %s20
      // Predicated region
      $region65: #{tpu_custom_call.1} parent=5 // pred_check
        %p942 = pneg %p941
      $region66: #{tpu_custom_call.1} parent=5 // pred_check_branch
        %944 = sbr.rel (%p942) target = $region68
      $region67: #{tpu_custom_call.1} parent=5 // pred_region
        %s945 = ssub.s32 %s20, 2
        // Predicated region
        $region69: #{tpu_custom_call.1} parent=67 // pred_check
          %p946 = pneg %p201
        $region70: #{tpu_custom_call.1} parent=67 // pred_check_branch
          %948 = sbr.rel (%p946) target = $region72
        $region71: #{tpu_custom_call.1} parent=67 // pred_region
          %s949 = sand.u32 %s186, 1
          %s950 = scalar_lea.sflag [#allocation4], %s949
          %s951 = sand.u32 %s186, 1
          %s952 = smul.addr %s951, 32
          %s953 = scalar_lea.vmem [#allocation8], %s952
          %954 = dma.done %s950, 512
        $region72: #{tpu_custom_call.1} parent=67 // pred_fallthru
          _
      $region68: #{tpu_custom_call.1} parent=5 // pred_fallthru
        _
    $region6: #{tpu_custom_call.1} parent=1 // loop_footer
      %s24 = sadd.s32 1, %s20
    $region7: #{tpu_custom_call.1} parent=1 // loop_footer_branch
      %19 = sbr.rel target = $region3
    $region8: #{tpu_custom_call.1} parent=1 // loop_exit
      _
    %955 = vsyncpa [#allocation3], 1
    %s956 = scalar_lea.sflag [#allocation3], 1
    %957 = vsyncpa %s956, 1
    %958 = vsyncpa [#allocation6], 1
    %959 = vsyncpa [#allocation4], 1
    %s960 = scalar_lea.sflag [#allocation4], 1
    %961 = vsyncpa %s960, 1

</llo_original>
